<compile_context>
chip_gen: v6e
topology: v6e:2x2x1
jax: 0.10.0
libtpu: 0.0.40
codegen_flags: <defaults>
</compile_context>

<pallas_src>
import jax
import jax.numpy as jnp
from jax.experimental import pallas as pl
from jax.experimental.pallas import tpu as pltpu


def rcnn_head_kernel(x_ref, wih_ref, whh_ref, brnn_ref, wc_ref, bc_ref,
                     o_ref, z_ref):
    # x_ref:   [B, S, H]  transformer hidden states
    # wih_ref: [H, R]     RNN input weights (pre-transposed)
    # whh_ref: [R, R]     RNN hidden weights (pre-transposed)
    # brnn_ref:[1, R]     b_ih + b_hh (folded)
    # wc_ref:  [H+R, L]   classifier weight (pre-transposed)
    # bc_ref:  [1, L]
    # z_ref:   [S, B, R]  VMEM scratch (time-major input projections)
    B, S, H = x_ref.shape
    R = wih_ref.shape[1]

    x = x_ref[...]                                              # [B, S, H]

    # --- RNN input projection for all (b, t) at once: M = B*S (MXU-friendly).
    z = jnp.dot(x.reshape(B * S, H), wih_ref[...],
                preferred_element_type=jnp.float32)
    z = z + brnn_ref[...]                                       # folded biases
    # One relayout to time-major so the loop reads z_ref[t] (leading axis).
    z_ref[...] = pltpu.einshape("bsr->sbr", z.reshape(B, S, R))

    whh = whh_ref[...]                                          # [R, R]

    # --- sequential recurrence; running max implements relu + max-pool over
    # time for the RNN half (zero init == ReLU floor: max_t relu(h)=max(0,max_t h)).
    def step(t, carry):
        h, hmax = carry
        h = jnp.tanh(z_ref[t]
                     + jnp.dot(h, whh, preferred_element_type=jnp.float32))
        return h, jnp.maximum(hmax, h)

    zeros = jnp.zeros((B, R), jnp.float32)
    _, pooled_rnn = jax.lax.fori_loop(0, S, step, (zeros, zeros))   # [B, R]

    # --- relu + max-pool over time of the seq_output half of the concat
    # (relu is monotone, so relu(max_t x) == max_t relu(x)).
    pooled_seq = jnp.maximum(jnp.max(x, axis=1), 0.0)               # [B, H]

    # --- classifier: split weight rows instead of concatenating features.
    # dropout is identity in eval mode.
    wc = wc_ref[...]                                                # [H+R, L]
    logits = (jnp.dot(pooled_seq, wc[:H, :], preferred_element_type=jnp.float32)
              + jnp.dot(pooled_rnn, wc[H:, :], preferred_element_type=jnp.float32)
              + bc_ref[...])
    o_ref[...] = logits.astype(o_ref.dtype)                         # single store


def rcnn_head(seq_output, w_ih, w_hh, b_rnn, clf_w, clf_b):
    """seq_output: [B, S, H] float32 (transformer output).
    w_ih:  [H, R]      (PyTorch weight_ih_l0 [R, H] transposed)
    w_hh:  [R, R]      (PyTorch weight_hh_l0 [R, R] transposed)
    b_rnn: [1, R]      (b_ih + b_hh)
    clf_w: [H+R, L]    (PyTorch Linear weight [L, H+R] transposed)
    clf_b: [1, L]
    """
    B, S, H = seq_output.shape
    R = w_ih.shape[1]
    num_labels = clf_w.shape[1]

    vmem = pl.BlockSpec(memory_space=pltpu.MemorySpace.VMEM)
    return pl.pallas_call(
        rcnn_head_kernel,
        out_shape=jax.ShapeDtypeStruct((B, num_labels), jnp.float32),
        in_specs=[vmem] * 6,
        out_specs=vmem,
        scratch_shapes=[pltpu.VMEM((S, B, R), jnp.float32)],
        # No grid: everything fits in VMEM, a single step avoids B pipeline
        # steps of pure overhead.  For large B, add a leading "parallel"
        # batch-block axis (2 blocks on v7x's two TensorCores).
    )(seq_output, w_ih, w_hh, b_rnn, clf_w, clf_b)


def rcnn_head_ref(seq_output, w_ih, w_hh, b_rnn, clf_w, clf_b):
    """Pure-JAX reference mirroring the PyTorch forward (tanh RNN, eval mode)."""
    B, S, H = seq_output.shape
    R = w_ih.shape[1]

    def step(h, xt):
        h = jnp.tanh(xt @ w_ih + b_rnn + h @ w_hh)
        return h, h

    h0 = jnp.zeros((B, R), jnp.float32)
    _, hs = jax.lax.scan(step, h0, jnp.transpose(seq_output, (1, 0, 2)))
    rnn_out = jnp.transpose(hs, (1, 0, 2))                     # [B, S, R]
    x = jax.nn.relu(jnp.concatenate([seq_output, rnn_out], axis=2))
    pooled = jnp.max(x, axis=1)                                # MaxPool1d(max_length)
    return pooled @ clf_w + clf_b                              # dropout = identity


if __name__ == "__main__":
    # Small shapes consistent with the module's forward.
    B, S, H = 2, 16, 32      # batch, max_length (seq len), hidden_size
    R = 32                   # args.rnn_hidden_dim (unidirectional, 1 layer)
    NUM_LABELS = 4           # args.num_labels

    key = jax.random.PRNGKey(0)
    k = jax.random.split(key, 6)

    # Synthetic transformer output (seq_output = outputs[0]).
    seq_output = jax.random.normal(k[0], (B, S, H), jnp.float32)

    # nn.RNN(H, R) parameters, pre-transposed; b_ih + b_hh folded into b_rnn.
    w_ih = 0.1 * jax.random.normal(k[1], (H, R), jnp.float32)
    w_hh = 0.1 * jax.random.normal(k[2], (R, R), jnp.float32)
    b_rnn = 0.1 * jax.random.normal(k[3], (1, R), jnp.float32)

    # Linear(H + R, num_labels): weight stored pre-transposed [H+R, L].
    clf_w = 0.1 * jax.random.normal(k[4], (H + R, NUM_LABELS), jnp.float32)
    clf_b = 0.1 * jax.random.normal(k[5], (1, NUM_LABELS), jnp.float32)

    logits = rcnn_head(seq_output, w_ih, w_hh, b_rnn, clf_w, clf_b)
    jax.block_until_ready(logits)

    ref = rcnn_head_ref(seq_output, w_ih, w_hh, b_rnn, clf_w, clf_b)
    assert logits.shape == (B, NUM_LABELS)
    assert jnp.allclose(logits, ref, atol=2e-4, rtol=2e-4)

    print("KERNEL_OK")
</pallas_src>

<mosaic_0001>
module attributes {stable_mosaic.version = 11 : i64} {
  func.func @rcnn_head_kernel(%arg0: memref<2x16x32xf32, #tpu.memory_space<vmem>>, %arg1: memref<32x32xf32, #tpu.memory_space<vmem>>, %arg2: memref<32x32xf32, #tpu.memory_space<vmem>>, %arg3: memref<1x32xf32, #tpu.memory_space<vmem>>, %arg4: memref<64x4xf32, #tpu.memory_space<vmem>>, %arg5: memref<1x4xf32, #tpu.memory_space<vmem>>, %arg6: memref<2x4xf32, #tpu.memory_space<vmem>>, %arg7: memref<16x2x32xf32, #tpu.memory_space<vmem>>) attributes {dimension_semantics = [], scalar_prefetch = 0 : i64, scratch_operands = 1 : i64, tpu.core_type = #tpu.core_type<tc>} {
    %c0 = arith.constant 0 : index
    %c0_0 = arith.constant 0 : index
    %c0_1 = arith.constant 0 : index
    %0 = vector.load %arg0[%c0, %c0_0, %c0_1] : memref<2x16x32xf32, #tpu.memory_space<vmem>>, vector<2x16x32xf32>
    %1 = vector.shape_cast %0 : vector<2x16x32xf32> to vector<32x32xf32>
    %c0_2 = arith.constant 0 : index
    %c0_3 = arith.constant 0 : index
    %2 = vector.load %arg1[%c0_2, %c0_3] : memref<32x32xf32, #tpu.memory_space<vmem>>, vector<32x32xf32>
    %cst = arith.constant dense<0.000000e+00> : vector<32x32xf32>
    %3 = tpu.matmul %1, %2, %cst {dimension_numbers = #tpu.dot_dimension_numbers<[1], [0], [0], [1], [0, 0, 1, 1], [], []>} : vector<32x32xf32>, vector<32x32xf32>, vector<32x32xf32> -> vector<32x32xf32>
    %c0_4 = arith.constant 0 : index
    %c0_5 = arith.constant 0 : index
    %4 = vector.load %arg3[%c0_4, %c0_5] : memref<1x32xf32, #tpu.memory_space<vmem>>, vector<1x32xf32>
    %5 = vector.broadcast %4 : vector<1x32xf32> to vector<32x32xf32>
    %6 = arith.addf %3, %5 : vector<32x32xf32>
    %7 = vector.shape_cast %6 : vector<32x32xf32> to vector<2x16x32xf32>
    %8 = tpu.transpose %7, [1, 0, 2] : vector<2x16x32xf32> -> vector<16x2x32xf32>
    %c0_6 = arith.constant 0 : index
    %c0_7 = arith.constant 0 : index
    %c0_8 = arith.constant 0 : index
    %9 = vector.load %arg7[%c0_6, %c0_7, %c0_8] : memref<16x2x32xf32, #tpu.memory_space<vmem>>, vector<16x2x32xf32>
    tpu.vector_store %arg7[%c0_6, %c0_7, %c0_8], %8 {strides = array<i32>} : memref<16x2x32xf32, #tpu.memory_space<vmem>>, vector<16x2x32xf32>,
    %c0_9 = arith.constant 0 : index
    %c0_10 = arith.constant 0 : index
    %10 = vector.load %arg2[%c0_9, %c0_10] : memref<32x32xf32, #tpu.memory_space<vmem>>, vector<32x32xf32>
    %cst_11 = arith.constant 0.000000e+00 : f32
    %11 = vector.broadcast %cst_11 : f32 to vector<2x32xf32>
    %c0_i32 = arith.constant 0 : i32
    %c16_i32 = arith.constant 16 : i32
    %12 = arith.addi %c0_i32, %c16_i32 : i32
    %c1_i32 = arith.constant 1 : i32
    %13:2 = scf.for %arg8 = %c0_i32 to %12 step %c1_i32 iter_args(%arg9 = %11, %arg10 = %11) -> (vector<2x32xf32>, vector<2x32xf32>)  : i32 {
      %27 = arith.index_cast %arg8 : i32 to index
      %c0_23 = arith.constant 0 : index
      %c0_24 = arith.constant 0 : index
      %28 = vector.load %arg7[%27, %c0_23, %c0_24] : memref<16x2x32xf32, #tpu.memory_space<vmem>>, vector<1x2x32xf32>
      %29 = vector.shape_cast %28 : vector<1x2x32xf32> to vector<2x32xf32>
      %cst_25 = arith.constant dense<0.000000e+00> : vector<2x32xf32>
      %30 = tpu.matmul %arg9, %10, %cst_25 {dimension_numbers = #tpu.dot_dimension_numbers<[1], [0], [0], [1], [0, 0, 1, 1], [], []>} : vector<2x32xf32>, vector<32x32xf32>, vector<2x32xf32> -> vector<2x32xf32>
      %31 = arith.addf %29, %30 : vector<2x32xf32>
      %32 = math.tanh %31 : vector<2x32xf32>
      %33 = arith.maximumf %arg10, %32 : vector<2x32xf32>
      scf.yield %32, %33 : vector<2x32xf32>, vector<2x32xf32>
    }
    %c16_i32_12 = arith.constant 16 : i32
    %cst_13 = arith.constant dense<0xFF800000> : vector<2x32xf32>
    %14 = vector.multi_reduction <maximumf>, %0, %cst_13 [1] : vector<2x16x32xf32> to vector<2x32xf32>
    %cst_14 = arith.constant 0.000000e+00 : f32
    %15 = vector.broadcast %cst_14 : f32 to vector<2x32xf32>
    %16 = arith.maximumf %14, %15 : vector<2x32xf32>
    %c0_15 = arith.constant 0 : index
    %c0_16 = arith.constant 0 : index
    %17 = vector.load %arg4[%c0_15, %c0_16] : memref<64x4xf32, #tpu.memory_space<vmem>>, vector<64x4xf32>
    %18 = vector.extract_strided_slice %17 {offsets = [0, 0], sizes = [32, 4], strides = [1, 1]} : vector<64x4xf32> to vector<32x4xf32>
    %cst_17 = arith.constant dense<0.000000e+00> : vector<2x4xf32>
    %19 = tpu.matmul %16, %18, %cst_17 {dimension_numbers = #tpu.dot_dimension_numbers<[1], [0], [0], [1], [0, 0, 1, 1], [], []>} : vector<2x32xf32>, vector<32x4xf32>, vector<2x4xf32> -> vector<2x4xf32>
    %20 = vector.extract_strided_slice %17 {offsets = [32, 0], sizes = [32, 4], strides = [1, 1]} : vector<64x4xf32> to vector<32x4xf32>
    %cst_18 = arith.constant dense<0.000000e+00> : vector<2x4xf32>
    %21 = tpu.matmul %13#1, %20, %cst_18 {dimension_numbers = #tpu.dot_dimension_numbers<[1], [0], [0], [1], [0, 0, 1, 1], [], []>} : vector<2x32xf32>, vector<32x4xf32>, vector<2x4xf32> -> vector<2x4xf32>
    %22 = arith.addf %19, %21 : vector<2x4xf32>
    %c0_19 = arith.constant 0 : index
    %c0_20 = arith.constant 0 : index
    %23 = vector.load %arg5[%c0_19, %c0_20] : memref<1x4xf32, #tpu.memory_space<vmem>>, vector<1x4xf32>
    %24 = vector.broadcast %23 : vector<1x4xf32> to vector<2x4xf32>
    %25 = arith.addf %22, %24 : vector<2x4xf32>
    %c0_21 = arith.constant 0 : index
    %c0_22 = arith.constant 0 : index
    %26 = vector.load %arg6[%c0_21, %c0_22] : memref<2x4xf32, #tpu.memory_space<vmem>>, vector<2x4xf32>
    tpu.vector_store %arg6[%c0_21, %c0_22], %25 {strides = array<i32>} : memref<2x4xf32, #tpu.memory_space<vmem>>, vector<2x4xf32>,
    return
  }
}

</mosaic_0001>

<llo_original>
// kernel: tpu_custom_call.1
$region0: #{tpu_custom_call.1}
  #allocation0 [shape = 'u32[]', space=smem, size = 0x4, offset = 0x4, fixed_abs, tag = 'smem constant byte address 0x4 - core index']
  #allocation1 [shape = 'u32[144,128]{1,0:T(1,128)}', space=vmem, size = 0x12000, scoped, tag = 'internal scratch']
  #allocation2 [shape = 'f32[16,2,32]{2,1,0:T(2,128)}', space=vmem, size = 0x4000, scoped, tag = 'scratch operand']
  %s0 = inlined_call_operand.vmem [shape: f32[2,16,32], index: 0, kind: input, shape index: {}]
  %s1 = inlined_call_operand.vmem [shape: f32[32,32], index: 1, kind: input, shape index: {}]
  %s2 = inlined_call_operand.hbm [shape: f32[32,32], index: 2, kind: input, shape index: {}]
  %s3 = inlined_call_operand.vmem [shape: f32[1,32], index: 3, kind: input, shape index: {}]
  %s4 = inlined_call_operand.vmem [shape: f32[64,4], index: 4, kind: input, shape index: {}]
  %s5 = inlined_call_operand.vmem [shape: f32[1,4], index: 5, kind: input, shape index: {}]
  %s6 = inlined_call_operand.hbm [shape: f32[2,4], index: 6, kind: output, shape index: {}]
  %s7 = sld [smem:[#allocation0]]
  $region45: #{tpu_custom_call.1} parent=0
    _
  %s9 = ssub.s32 1, %s7
  %s10 = scalar_select 0, %s9, %s7
  $region1: #{tpu_custom_call.1} parent=0
    #allocation3 [shape = 'u8[16384]{0}', space=vmem, size = 0x4000, scoped, tag = 'input window, operand 2, single buffered']
    #allocation4 [shape = 's32[1]{0}', space=sflag, size = 0x4, scoped, tag = 'scoped memory for tpu_custom_call.1']
    #allocation5 [shape = 's32[1]{0}', space=sflag, size = 0x4, scoped, tag = 'scoped memory for tpu_custom_call.1']
    #allocation6 [shape = 'u8[1024]{0}', space=vmem, size = 0x400, scoped, tag = 'output window, operand 0, single buffered']
    %11 = vsyncpa [#allocation4], 0
    %12 = vsyncpa [#allocation5], 0
    // Predicated region
    $region2: #{tpu_custom_call.1} parent=1 // pred_check
      _
    $region3: #{tpu_custom_call.1} parent=1 // pred_check_branch
      %14 = sbr.rel (0) target = $region5
    $region4: #{tpu_custom_call.1} parent=1 // pred_region
      _
    $region5: #{tpu_custom_call.1} parent=1 // pred_fallthru
      _
    // Predicated region
    $region6: #{tpu_custom_call.1} parent=1 // pred_check
      _
    $region7: #{tpu_custom_call.1} parent=1 // pred_check_branch
      %16 = sbr.rel (0) target = $region9
    $region8: #{tpu_custom_call.1} parent=1 // pred_region
      _
    $region9: #{tpu_custom_call.1} parent=1 // pred_fallthru
      _
    // Predicated region
    $region10: #{tpu_custom_call.1} parent=1 // pred_check
      _
    $region11: #{tpu_custom_call.1} parent=1 // pred_check_branch
      %18 = sbr.rel (0) target = $region13
    $region12: #{tpu_custom_call.1} parent=1 // pred_region
      %s20 = ssub.s32 512, 512
      %21 = vsyncadd [#allocation4], %s20
      %s22 = sshll.u32 [#allocation3], 4
      %s23 = int_to_ptr.vmem [resolvable:$true] %s22
      %28 = dma.hbm_to_vmem [thread:$0]  %s2, 512, %s23, [#allocation4], 128, 128, 8
    $region13: #{tpu_custom_call.1} parent=1 // pred_fallthru
      _
    // Predicated region
    $region14: #{tpu_custom_call.1} parent=1 // pred_check
      _
    $region15: #{tpu_custom_call.1} parent=1 // pred_check_branch
      %30 = sbr.rel (0) target = $region17
    $region16: #{tpu_custom_call.1} parent=1 // pred_region
      _
    $region17: #{tpu_custom_call.1} parent=1 // pred_fallthru
      _
    // Predicated region
    $region18: #{tpu_custom_call.1} parent=1 // pred_check
      _
    $region19: #{tpu_custom_call.1} parent=1 // pred_check_branch
      %32 = sbr.rel (0) target = $region21
    $region20: #{tpu_custom_call.1} parent=1 // pred_region
      _
    $region21: #{tpu_custom_call.1} parent=1 // pred_fallthru
      _
    // Predicated region
    $region22: #{tpu_custom_call.1} parent=1 // pred_check
      _
    $region23: #{tpu_custom_call.1} parent=1 // pred_check_branch
      %34 = sbr.rel (0) target = $region25
    $region24: #{tpu_custom_call.1} parent=1 // pred_region
      _
    $region25: #{tpu_custom_call.1} parent=1 // pred_fallthru
      _
    // Predicated region
    $region26: #{tpu_custom_call.1} parent=1 // pred_check
      _
    $region27: #{tpu_custom_call.1} parent=1 // pred_check_branch
      %36 = sbr.rel (0) target = $region29
    $region28: #{tpu_custom_call.1} parent=1 // pred_region
      %37 = dma.done [#allocation4], 512
    $region29: #{tpu_custom_call.1} parent=1 // pred_fallthru
      _
    %v38 = vld [vmem:[%s0] sm:$0xff]
    %v39 = vld [vmem:[%s0 + $0x8] sm:$0xff]
    %v40 = vld [vmem:[%s0 + $0x10] sm:$0xff]
    %v41 = vld [vmem:[%s0 + $0x18] sm:$0xff]
    %v42 = vld [vmem:[%s1] sm:$0xff]
    %v43 = vld [vmem:[%s1 + $0x8] sm:$0xff]
    %v44 = vld [vmem:[%s1 + $0x10] sm:$0xff]
    %v45 = vld [vmem:[%s1 + $0x18] sm:$0xff]
    %v46 = vld [vmem:[%s3] sm:$0x1]
    %v48 = vlaneseq
    %v49 = vshrl.u32 %v48, 7
    %v50 = vsub.s32 0, %v49
    %v51 = vrot.slane %v46, %v50
    %vm53 = vcmask 261120
    %v55 = vsel %vm53, %v38, 0
    %v58 = vsel %vm53, %v39, 0
    %v61 = vsel %vm53, %v40, 0
    %v64 = vsel %vm53, %v41, 0
    %66 = vmatprep.subr.mxu0 0.0
    %67 = vmatpush1.msra.mxu0 0.0
    %68 = vmatprep.subr.mxu0 0.0
    %69 = vmatpush1.msra.mxu0 0.0
    %70 = vmatprep.subr.mxu0 0.0
    %71 = vmatpush1.msra.mxu0 0.0
    %72 = vmatprep.subr.mxu0 0.0
    %73 = vmatpush1.msra.mxu0 0.0
    %74 = vmatprep.subr.mxu0 0.0
    %75 = vmatpush1.msra.mxu0 0.0
    %76 = vmatprep.subr.mxu0 0.0
    %77 = vmatpush1.msra.mxu0 0.0
    %78 = vmatprep.subr.mxu0 0.0
    %79 = vmatpush1.msra.mxu0 0.0
    %80 = vmatprep.subr.mxu0 0.0
    %81 = vmatpush1.msra.mxu0 0.0
    %82 = vmatprep.subr.mxu0 0.0
    %83 = vmatpush1.msra.mxu0 0.0
    %84 = vmatprep.subr.mxu0 0.0
    %85 = vmatpush1.msra.mxu0 0.0
    %86 = vmatprep.subr.mxu0 0.0
    %87 = vmatpush1.msra.mxu0 0.0
    %88 = vmatprep.subr.mxu0 0.0
    %89 = vmatpush1.msra.mxu0 0.0
    %90 = vmatprep.subr.mxu0 0.0
    %91 = vmatpush1.msra.mxu0 %v45
    %92 = vmatprep.subr.mxu0 0.0
    %93 = vmatpush1.msra.mxu0 %v44
    %94 = vmatprep.subr.mxu0 0.0
    %95 = vmatpush1.msra.mxu0 %v43
    %96 = vmatprep.subr.mxu0 0.0
    %97 = vmatpush1.msra.mxu0 %v42
    %98 = vmatprep.subr.mxu0 0.0
    %99 = vmatpush2.msra.mxu0 0.0
    %100 = vmatprep.subr.mxu0 0.0
    %101 = vmatpush2.msra.mxu0 0.0
    %102 = vmatprep.subr.mxu0 0.0
    %103 = vmatpush2.msra.mxu0 0.0
    %104 = vmatprep.subr.mxu0 0.0
    %105 = vmatpush2.msra.mxu0 0.0
    %106 = vmatprep.subr.mxu0 0.0
    %107 = vmatpush2.msra.mxu0 0.0
    %108 = vmatprep.subr.mxu0 0.0
    %109 = vmatpush2.msra.mxu0 0.0
    %110 = vmatprep.subr.mxu0 0.0
    %111 = vmatpush2.msra.mxu0 0.0
    %112 = vmatprep.subr.mxu0 0.0
    %113 = vmatpush2.msra.mxu0 0.0
    %114 = vmatprep.subr.mxu0 0.0
    %115 = vmatpush2.msra.mxu0 0.0
    %116 = vmatprep.subr.mxu0 0.0
    %117 = vmatpush2.msra.mxu0 0.0
    %118 = vmatprep.subr.mxu0 0.0
    %119 = vmatpush2.msra.mxu0 0.0
    %120 = vmatprep.subr.mxu0 0.0
    %121 = vmatpush2.msra.mxu0 0.0
    %122 = vmatprep.subr.mxu0 0.0
    %123 = vmatpush2.msra.mxu0 0.0
    %124 = vmatprep.subr.mxu0 0.0
    %125 = vmatpush2.msra.mxu0 0.0
    %126 = vmatprep.subr.mxu0 0.0
    %127 = vmatpush2.msra.mxu0 0.0
    %128 = vmatprep.subr.mxu0 0.0
    %129 = vmatpush2.msra.mxu0 0.0
    %130 = vmatprep.mubr.f32.mxu0 0.0
    %131 = vmatmul.mubr.f32.gmra.mxu0 %v55
    %v132 = vpop.f32.mrf.mxu0
    %v133 = vadd.f32 %v51, %v132
    %v134 = vpop.f32.mrf.mxu0
    %135 = vmatprep.mubr.f32.mxu0 0.0
    %136 = vmatmul.mubr.f32.gmra.mxu0 %v58
    %v137 = vpop.f32.mrf.mxu0
    %v138 = vadd.f32 %v51, %v137
    %v139 = vpop.f32.mrf.mxu0
    %140 = vmatprep.mubr.f32.mxu0 0.0
    %141 = vmatmul.mubr.f32.gmra.mxu0 %v61
    %v142 = vpop.f32.mrf.mxu0
    %v143 = vadd.f32 %v51, %v142
    %v144 = vpop.f32.mrf.mxu0
    %145 = vmatprep.mubr.f32.mxu0 0.0
    %146 = vmatmul.mubr.f32.gmra.mxu0 %v64
    %v147 = vpop.f32.mrf.mxu0
    %v148 = vadd.f32 %v51, %v147
    %v149 = vpop.f32.mrf.mxu0
    %150 = vdwg.mxu0
    %v151 = vcombine.high %v133, 0.0
    %v153 = vunpack.c.l.s4 1983009808
    %v154 = vunpack.c.0.s8 %v153
    %v155 = vlaneseq
    %v156 = vshrl.u32 %v155, 7
    %v157 = vsub.s32 %v154, %v156
    %v158 = vrot.slane %v133, %v157
    %v160 = vunpack.c.l.s4 1983009808
    %v161 = vunpack.c.0.s8 %v160
    %v162 = vlaneseq
    %v163 = vshrl.u32 %v162, 7
    %v164 = vsub.s32 %v161, %v163
    %v165 = vrot.slane %v151, %v164
    %v166 = vcombine.high %v143, 0.0
    %v168 = vunpack.c.l.s4 1983009808
    %v169 = vunpack.c.0.s8 %v168
    %v170 = vlaneseq
    %v171 = vshrl.u32 %v170, 7
    %v172 = vsub.s32 %v169, %v171
    %v173 = vrot.slane %v143, %v172
    %v175 = vunpack.c.l.s4 1983009808
    %v176 = vunpack.c.0.s8 %v175
    %v177 = vlaneseq
    %v178 = vshrl.u32 %v177, 7
    %v179 = vsub.s32 %v176, %v178
    %v180 = vrot.slane %v166, %v179
    %v181 = vcombine.low %v158, %v173
    %v182 = vcombine.high %v158, %v173
    %v184 = vunpack.c.l.s4 1934713408
    %v185 = vunpack.c.0.s8 %v184
    %v186 = vlaneseq
    %v187 = vshrl.u32 %v186, 7
    %v188 = vsub.s32 %v185, %v187
    %v189 = vrot.slane %v181, %v188
    %v191 = vunpack.c.l.s4 1934713408
    %v192 = vunpack.c.0.s8 %v191
    %v193 = vlaneseq
    %v194 = vshrl.u32 %v193, 7
    %v195 = vsub.s32 %v192, %v194
    %v196 = vrot.slane %v182, %v195
    %v197 = vcombine.low %v165, %v180
    %v198 = vcombine.high %v165, %v180
    %v200 = vunpack.c.l.s4 1934713408
    %v201 = vunpack.c.0.s8 %v200
    %v202 = vlaneseq
    %v203 = vshrl.u32 %v202, 7
    %v204 = vsub.s32 %v201, %v203
    %v205 = vrot.slane %v197, %v204
    %v207 = vunpack.c.l.s4 1934713408
    %v208 = vunpack.c.0.s8 %v207
    %v209 = vlaneseq
    %v210 = vshrl.u32 %v209, 7
    %v211 = vsub.s32 %v208, %v210
    %v212 = vrot.slane %v198, %v211
    %v213 = vcombine.high %v189, 0.0
    %v214 = vcombine.high %v196, 0.0
    %v215 = vcombine.high %v205, 0.0
    %v216 = vcombine.high %v212, 0.0
    %v217 = vcombine.high %v138, 0.0
    %v219 = vunpack.c.l.s4 1983009808
    %v220 = vunpack.c.0.s8 %v219
    %v221 = vlaneseq
    %v222 = vshrl.u32 %v221, 7
    %v223 = vsub.s32 %v220, %v222
    %v224 = vrot.slane %v138, %v223
    %v226 = vunpack.c.l.s4 1983009808
    %v227 = vunpack.c.0.s8 %v226
    %v228 = vlaneseq
    %v229 = vshrl.u32 %v228, 7
    %v230 = vsub.s32 %v227, %v229
    %v231 = vrot.slane %v217, %v230
    %v232 = vcombine.high %v148, 0.0
    %v234 = vunpack.c.l.s4 1983009808
    %v235 = vunpack.c.0.s8 %v234
    %v236 = vlaneseq
    %v237 = vshrl.u32 %v236, 7
    %v238 = vsub.s32 %v235, %v237
    %v239 = vrot.slane %v148, %v238
    %v241 = vunpack.c.l.s4 1983009808
    %v242 = vunpack.c.0.s8 %v241
    %v243 = vlaneseq
    %v244 = vshrl.u32 %v243, 7
    %v245 = vsub.s32 %v242, %v244
    %v246 = vrot.slane %v232, %v245
    %v247 = vcombine.low %v224, %v239
    %v248 = vcombine.high %v224, %v239
    %v250 = vunpack.c.l.s4 1934713408
    %v251 = vunpack.c.0.s8 %v250
    %v252 = vlaneseq
    %v253 = vshrl.u32 %v252, 7
    %v254 = vsub.s32 %v251, %v253
    %v255 = vrot.slane %v247, %v254
    %v257 = vunpack.c.l.s4 1934713408
    %v258 = vunpack.c.0.s8 %v257
    %v259 = vlaneseq
    %v260 = vshrl.u32 %v259, 7
    %v261 = vsub.s32 %v258, %v260
    %v262 = vrot.slane %v248, %v261
    %v263 = vcombine.low %v231, %v246
    %v264 = vcombine.high %v231, %v246
    %v266 = vunpack.c.l.s4 1934713408
    %v267 = vunpack.c.0.s8 %v266
    %v268 = vlaneseq
    %v269 = vshrl.u32 %v268, 7
    %v270 = vsub.s32 %v267, %v269
    %v271 = vrot.slane %v263, %v270
    %v273 = vunpack.c.l.s4 1934713408
    %v274 = vunpack.c.0.s8 %v273
    %v275 = vlaneseq
    %v276 = vshrl.u32 %v275, 7
    %v277 = vsub.s32 %v274, %v276
    %v278 = vrot.slane %v264, %v277
    %v279 = vcombine.high %v255, 0.0
    %v280 = vcombine.high %v262, 0.0
    %v281 = vcombine.high %v271, 0.0
    %v282 = vcombine.high %v278, 0.0
    %vm283 = vcmask 254976
    %284 = vst.msk [vmem:[#allocation2] sm:$0x3] %vm283, %v189
    %285 = vst.msk [vmem:[#allocation2 + $0x2] sm:$0x3] %vm283, %v213
    %286 = vst.msk [vmem:[#allocation2 + $0x4] sm:$0x3] %vm283, %v196
    %287 = vst.msk [vmem:[#allocation2 + $0x6] sm:$0x3] %vm283, %v214
    %288 = vst.msk [vmem:[#allocation2 + $0x8] sm:$0x3] %vm283, %v205
    %289 = vst.msk [vmem:[#allocation2 + $0xa] sm:$0x3] %vm283, %v215
    %290 = vst.msk [vmem:[#allocation2 + $0xc] sm:$0x3] %vm283, %v212
    %291 = vst.msk [vmem:[#allocation2 + $0xe] sm:$0x3] %vm283, %v216
    %292 = vst.msk [vmem:[#allocation2 + $0x10] sm:$0x3] %vm283, %v255
    %293 = vst.msk [vmem:[#allocation2 + $0x12] sm:$0x3] %vm283, %v279
    %294 = vst.msk [vmem:[#allocation2 + $0x14] sm:$0x3] %vm283, %v262
    %295 = vst.msk [vmem:[#allocation2 + $0x16] sm:$0x3] %vm283, %v280
    %296 = vst.msk [vmem:[#allocation2 + $0x18] sm:$0x3] %vm283, %v271
    %297 = vst.msk [vmem:[#allocation2 + $0x1a] sm:$0x3] %vm283, %v281
    %298 = vst.msk [vmem:[#allocation2 + $0x1c] sm:$0x3] %vm283, %v278
    %299 = vst.msk [vmem:[#allocation2 + $0x1e] sm:$0x3] %vm283, %v282
    %v300 = vld [vmem:[#allocation3] sm:$0xff]
    %v301 = vld [vmem:[#allocation3 + $0x8] sm:$0xff]
    %v302 = vld [vmem:[#allocation3 + $0x10] sm:$0xff]
    %v303 = vld [vmem:[#allocation3 + $0x18] sm:$0xff]
    loop: start=0, step=1, limit=16
    $region30: #{tpu_custom_call.1} parent=1 // loop_pre_header
      _
    $region31: #{tpu_custom_call.1} parent=1 // loop_header
      %s305 = sphi 0, %s309
      %p306 = scmp.ge.s32.totalorder %s305, 16
      %v310 = vphi 0.0, %v389
      %v311 = vphi 0.0, %v390
    $region32: #{tpu_custom_call.1} parent=1 // loop_header_branch
      %308 = sbr.rel (%p306) target = $region36
    $region33: #{tpu_custom_call.1} parent=1 // loop_body
      %s312 = smul.u32 %s305, 2
      %s313 = scalar_lea.vmem [#allocation2], %s312
      %v314 = vld [vmem:[%s313] sm:$0x3]
      %v316 = vsel %vm53, %v310, 0
      %318 = vmatprep.subr.mxu0 0.0
      %319 = vmatpush1.msra.mxu0 0.0
      %320 = vmatprep.subr.mxu0 0.0
      %321 = vmatpush1.msra.mxu0 0.0
      %322 = vmatprep.subr.mxu0 0.0
      %323 = vmatpush1.msra.mxu0 0.0
      %324 = vmatprep.subr.mxu0 0.0
      %325 = vmatpush1.msra.mxu0 0.0
      %326 = vmatprep.subr.mxu0 0.0
      %327 = vmatpush1.msra.mxu0 0.0
      %328 = vmatprep.subr.mxu0 0.0
      %329 = vmatpush1.msra.mxu0 0.0
      %330 = vmatprep.subr.mxu0 0.0
      %331 = vmatpush1.msra.mxu0 0.0
      %332 = vmatprep.subr.mxu0 0.0
      %333 = vmatpush1.msra.mxu0 0.0
      %334 = vmatprep.subr.mxu0 0.0
      %335 = vmatpush1.msra.mxu0 0.0
      %336 = vmatprep.subr.mxu0 0.0
      %337 = vmatpush1.msra.mxu0 0.0
      %338 = vmatprep.subr.mxu0 0.0
      %339 = vmatpush1.msra.mxu0 0.0
      %340 = vmatprep.subr.mxu0 0.0
      %341 = vmatpush1.msra.mxu0 0.0
      %342 = vmatprep.subr.mxu0 0.0
      %343 = vmatpush1.msra.mxu0 %v303
      %344 = vmatprep.subr.mxu0 0.0
      %345 = vmatpush1.msra.mxu0 %v302
      %346 = vmatprep.subr.mxu0 0.0
      %347 = vmatpush1.msra.mxu0 %v301
      %348 = vmatprep.subr.mxu0 0.0
      %349 = vmatpush1.msra.mxu0 %v300
      %350 = vmatprep.subr.mxu0 0.0
      %351 = vmatpush2.msra.mxu0 0.0
      %352 = vmatprep.subr.mxu0 0.0
      %353 = vmatpush2.msra.mxu0 0.0
      %354 = vmatprep.subr.mxu0 0.0
      %355 = vmatpush2.msra.mxu0 0.0
      %356 = vmatprep.subr.mxu0 0.0
      %357 = vmatpush2.msra.mxu0 0.0
      %358 = vmatprep.subr.mxu0 0.0
      %359 = vmatpush2.msra.mxu0 0.0
      %360 = vmatprep.subr.mxu0 0.0
      %361 = vmatpush2.msra.mxu0 0.0
      %362 = vmatprep.subr.mxu0 0.0
      %363 = vmatpush2.msra.mxu0 0.0
      %364 = vmatprep.subr.mxu0 0.0
      %365 = vmatpush2.msra.mxu0 0.0
      %366 = vmatprep.subr.mxu0 0.0
      %367 = vmatpush2.msra.mxu0 0.0
      %368 = vmatprep.subr.mxu0 0.0
      %369 = vmatpush2.msra.mxu0 0.0
      %370 = vmatprep.subr.mxu0 0.0
      %371 = vmatpush2.msra.mxu0 0.0
      %372 = vmatprep.subr.mxu0 0.0
      %373 = vmatpush2.msra.mxu0 0.0
      %374 = vmatprep.subr.mxu0 0.0
      %375 = vmatpush2.msra.mxu0 0.0
      %376 = vmatprep.subr.mxu0 0.0
      %377 = vmatpush2.msra.mxu0 0.0
      %378 = vmatprep.subr.mxu0 0.0
      %379 = vmatpush2.msra.mxu0 0.0
      %380 = vmatprep.subr.mxu0 0.0
      %381 = vmatpush2.msra.mxu0 0.0
      %382 = vmatprep.mubr.f32.mxu0 0.0
      %383 = vmatmul.mubr.f32.gmra.mxu0 %v316
      %v384 = vpop.f32.mrf.mxu0
      %v385 = vadd.f32 0.0, %v384
      %v386 = vpop.f32.mrf.mxu0
      %387 = vdwg.mxu0
      %v388 = vadd.f32 %v314, %v385
      %v389 = vtanh.pop %v388
      %v390 = vmax.f32 %v311, %v389
    $region34: #{tpu_custom_call.1} parent=1 // loop_footer
      %s309 = sadd.s32 1, %s305
    $region35: #{tpu_custom_call.1} parent=1 // loop_footer_branch
      %304 = sbr.rel target = $region31
    $region36: #{tpu_custom_call.1} parent=1 // loop_exit
      _
    %v391 = vsel %vm53, %v38, -inf
    %v392 = vsel %vm53, %v39, -inf
    %v393 = vmax.f32 %v391, %v392
    %v394 = vrot.slane %v393, 4
    %v395 = vmax.f32 %v393, %v394
    %v396 = vrot.slane %v395, 2
    %v397 = vmax.f32 %v395, %v396
    %v398 = vrot.slane %v397, 1
    %v399 = vmax.f32 %v397, %v398
    %v400 = vsel %vm53, %v40, -inf
    %v401 = vsel %vm53, %v41, -inf
    %v402 = vmax.f32 %v400, %v401
    %v403 = vrot.slane %v402, 4
    %v404 = vmax.f32 %v402, %v403
    %v405 = vrot.slane %v404, 2
    %v406 = vmax.f32 %v404, %v405
    %v407 = vrot.slane %v406, 1
    %v408 = vmax.f32 %v406, %v407
    %v409 = vmax.f32 %v399, 0.0
    %v410 = vmax.f32 %v408, 0.0
    %v411 = vld [vmem:[%s4] sm:$0xff]
    %v412 = vld [vmem:[%s4 + $0x8] sm:$0xff]
    %v413 = vld [vmem:[%s4 + $0x10] sm:$0xff]
    %v414 = vld [vmem:[%s4 + $0x18] sm:$0xff]
    %v415 = vld [vmem:[%s4 + $0x20] sm:$0xff]
    %v416 = vld [vmem:[%s4 + $0x28] sm:$0xff]
    %v417 = vld [vmem:[%s4 + $0x30] sm:$0xff]
    %v418 = vld [vmem:[%s4 + $0x38] sm:$0xff]
    %v420 = vsel %vm53, %v311, 0
    %422 = vmatprep.subr.mxu0 0.0
    %423 = vmatpush1.msra.mxu0 0.0
    %424 = vmatprep.subr.mxu0 0.0
    %425 = vmatpush1.msra.mxu0 0.0
    %426 = vmatprep.subr.mxu0 0.0
    %427 = vmatpush1.msra.mxu0 0.0
    %428 = vmatprep.subr.mxu0 0.0
    %429 = vmatpush1.msra.mxu0 0.0
    %430 = vmatprep.subr.mxu0 0.0
    %431 = vmatpush1.msra.mxu0 0.0
    %432 = vmatprep.subr.mxu0 0.0
    %433 = vmatpush1.msra.mxu0 0.0
    %434 = vmatprep.subr.mxu0 0.0
    %435 = vmatpush1.msra.mxu0 0.0
    %436 = vmatprep.subr.mxu0 0.0
    %437 = vmatpush1.msra.mxu0 0.0
    %438 = vmatprep.subr.mxu0 0.0
    %439 = vmatpush1.msra.mxu0 0.0
    %440 = vmatprep.subr.mxu0 0.0
    %441 = vmatpush1.msra.mxu0 0.0
    %442 = vmatprep.subr.mxu0 0.0
    %443 = vmatpush1.msra.mxu0 0.0
    %444 = vmatprep.subr.mxu0 0.0
    %445 = vmatpush1.msra.mxu0 0.0
    %446 = vmatprep.subr.mxu0 0.0
    %447 = vmatpush1.msra.mxu0 %v418
    %448 = vmatprep.subr.mxu0 0.0
    %449 = vmatpush1.msra.mxu0 %v417
    %450 = vmatprep.subr.mxu0 0.0
    %451 = vmatpush1.msra.mxu0 %v416
    %452 = vmatprep.subr.mxu0 0.0
    %453 = vmatpush1.msra.mxu0 %v415
    %454 = vmatprep.subr.mxu0 0.0
    %455 = vmatpush2.msra.mxu0 0.0
    %456 = vmatprep.subr.mxu0 0.0
    %457 = vmatpush2.msra.mxu0 0.0
    %458 = vmatprep.subr.mxu0 0.0
    %459 = vmatpush2.msra.mxu0 0.0
    %460 = vmatprep.subr.mxu0 0.0
    %461 = vmatpush2.msra.mxu0 0.0
    %462 = vmatprep.subr.mxu0 0.0
    %463 = vmatpush2.msra.mxu0 0.0
    %464 = vmatprep.subr.mxu0 0.0
    %465 = vmatpush2.msra.mxu0 0.0
    %466 = vmatprep.subr.mxu0 0.0
    %467 = vmatpush2.msra.mxu0 0.0
    %468 = vmatprep.subr.mxu0 0.0
    %469 = vmatpush2.msra.mxu0 0.0
    %470 = vmatprep.subr.mxu0 0.0
    %471 = vmatpush2.msra.mxu0 0.0
    %472 = vmatprep.subr.mxu0 0.0
    %473 = vmatpush2.msra.mxu0 0.0
    %474 = vmatprep.subr.mxu0 0.0
    %475 = vmatpush2.msra.mxu0 0.0
    %476 = vmatprep.subr.mxu0 0.0
    %477 = vmatpush2.msra.mxu0 0.0
    %478 = vmatprep.subr.mxu0 0.0
    %479 = vmatpush2.msra.mxu0 0.0
    %480 = vmatprep.subr.mxu0 0.0
    %481 = vmatpush2.msra.mxu0 0.0
    %482 = vmatprep.subr.mxu0 0.0
    %483 = vmatpush2.msra.mxu0 0.0
    %484 = vmatprep.subr.mxu0 0.0
    %485 = vmatpush2.msra.mxu0 0.0
    %486 = vmatprep.mubr.f32.mxu0 0.0
    %487 = vmatmul.mubr.f32.gmra.mxu0 %v420
    %v488 = vpop.f32.mrf.mxu0
    %v489 = vadd.f32 0.0, %v488
    %v490 = vpop.f32.mrf.mxu0
    %491 = vdwg.mxu0
    %vm494 = vcmask 1041409
    %v495 = vsel %vm494, %v410, %v409
    %v496 = vsel %vm53, %v495, 0
    %498 = vmatprep.subr.mxu0 0.0
    %499 = vmatpush1.msra.mxu0 0.0
    %500 = vmatprep.subr.mxu0 0.0
    %501 = vmatpush1.msra.mxu0 0.0
    %502 = vmatprep.subr.mxu0 0.0
    %503 = vmatpush1.msra.mxu0 0.0
    %504 = vmatprep.subr.mxu0 0.0
    %505 = vmatpush1.msra.mxu0 0.0
    %506 = vmatprep.subr.mxu0 0.0
    %507 = vmatpush1.msra.mxu0 0.0
    %508 = vmatprep.subr.mxu0 0.0
    %509 = vmatpush1.msra.mxu0 0.0
    %510 = vmatprep.subr.mxu0 0.0
    %511 = vmatpush1.msra.mxu0 0.0
    %512 = vmatprep.subr.mxu0 0.0
    %513 = vmatpush1.msra.mxu0 0.0
    %514 = vmatprep.subr.mxu0 0.0
    %515 = vmatpush1.msra.mxu0 0.0
    %516 = vmatprep.subr.mxu0 0.0
    %517 = vmatpush1.msra.mxu0 0.0
    %518 = vmatprep.subr.mxu0 0.0
    %519 = vmatpush1.msra.mxu0 0.0
    %520 = vmatprep.subr.mxu0 0.0
    %521 = vmatpush1.msra.mxu0 0.0
    %522 = vmatprep.subr.mxu0 0.0
    %523 = vmatpush1.msra.mxu0 %v414
    %524 = vmatprep.subr.mxu0 0.0
    %525 = vmatpush1.msra.mxu0 %v413
    %526 = vmatprep.subr.mxu0 0.0
    %527 = vmatpush1.msra.mxu0 %v412
    %528 = vmatprep.subr.mxu0 0.0
    %529 = vmatpush1.msra.mxu0 %v411
    %530 = vmatprep.subr.mxu0 0.0
    %531 = vmatpush2.msra.mxu0 0.0
    %532 = vmatprep.subr.mxu0 0.0
    %533 = vmatpush2.msra.mxu0 0.0
    %534 = vmatprep.subr.mxu0 0.0
    %535 = vmatpush2.msra.mxu0 0.0
    %536 = vmatprep.subr.mxu0 0.0
    %537 = vmatpush2.msra.mxu0 0.0
    %538 = vmatprep.subr.mxu0 0.0
    %539 = vmatpush2.msra.mxu0 0.0
    %540 = vmatprep.subr.mxu0 0.0
    %541 = vmatpush2.msra.mxu0 0.0
    %542 = vmatprep.subr.mxu0 0.0
    %543 = vmatpush2.msra.mxu0 0.0
    %544 = vmatprep.subr.mxu0 0.0
    %545 = vmatpush2.msra.mxu0 0.0
    %546 = vmatprep.subr.mxu0 0.0
    %547 = vmatpush2.msra.mxu0 0.0
    %548 = vmatprep.subr.mxu0 0.0
    %549 = vmatpush2.msra.mxu0 0.0
    %550 = vmatprep.subr.mxu0 0.0
    %551 = vmatpush2.msra.mxu0 0.0
    %552 = vmatprep.subr.mxu0 0.0
    %553 = vmatpush2.msra.mxu0 0.0
    %554 = vmatprep.subr.mxu0 0.0
    %555 = vmatpush2.msra.mxu0 0.0
    %556 = vmatprep.subr.mxu0 0.0
    %557 = vmatpush2.msra.mxu0 0.0
    %558 = vmatprep.subr.mxu0 0.0
    %559 = vmatpush2.msra.mxu0 0.0
    %560 = vmatprep.subr.mxu0 0.0
    %561 = vmatpush2.msra.mxu0 0.0
    %562 = vmatprep.mubr.f32.mxu0 0.0
    %563 = vmatmul.mubr.f32.gmra.mxu0 %v496
    %v564 = vpop.f32.mrf.mxu0
    %v565 = vadd.f32 %v489, %v564
    %v566 = vpop.f32.mrf.mxu0
    %567 = vdwg.mxu0
    %v568 = vld [vmem:[%s5] sm:$0x1]
    %v570 = vlaneseq
    %v571 = vshrl.u32 %v570, 7
    %v572 = vsub.s32 0, %v571
    %v573 = vrot.slane %v568, %v572
    %v575 = vadd.f32 %v565, %v573
    %vm576 = vcmask 25600
    %577 = vst.msk [vmem:[#allocation6] sm:$0x3] %vm576, %v575
    // Predicated region
    $region37: #{tpu_custom_call.1} parent=1 // pred_check
      _
    $region38: #{tpu_custom_call.1} parent=1 // pred_check_branch
      %579 = sbr.rel (0) target = $region40
    $region39: #{tpu_custom_call.1} parent=1 // pred_region
      %s581 = ssub.s32 32, 32
      %582 = vsyncadd [#allocation5], %s581
      %s584 = sshll.u32 [#allocation6], 4
      %s585 = int_to_ptr.vmem [resolvable:$true] %s584
      %587 = dma.vmem_to_hbm [thread:$0]  %s585, 32, %s6, [#allocation5]
    $region40: #{tpu_custom_call.1} parent=1 // pred_fallthru
      _
    // Predicated region
    $region41: #{tpu_custom_call.1} parent=1 // pred_check
      _
    $region42: #{tpu_custom_call.1} parent=1 // pred_check_branch
      %589 = sbr.rel (0) target = $region44
    $region43: #{tpu_custom_call.1} parent=1 // pred_region
      %590 = dma.done [#allocation5], 32
    $region44: #{tpu_custom_call.1} parent=1 // pred_fallthru
      _
    %591 = vsyncpa [#allocation4], 1
    %592 = vsyncpa [#allocation5], 1

</llo_original>
